<compile_context>
chip_gen: v6e
topology: v6e:2x2x1
jax: 0.10.0
libtpu: 0.0.40
codegen_flags: <defaults>
</compile_context>

<pallas_src>
import numpy as np
import jax
import jax.numpy as jnp
from jax.experimental import pallas as pl
from jax.experimental.pallas import tpu as pltpu


def _round_up(x, m):
    return (x + m - 1) // m * m


# ----------------------------------------------------------------------------
# Fused kernel: node-wise MLP (block-diagonal matmuls) + Euler broadcast over K
# ----------------------------------------------------------------------------
def _fused_kernel(x_ref, dt_ref, w1_ref, b1_ref, w2_ref, b2_ref, o_ref):
    """One grid step over a tile of TB rows of S*B.

    x_ref : (TB, N*d)      lane-dense latent-state rows (f32)
    dt_ref: (TB, K)        per-row time deltas
    w*_ref: block-diagonal (over N) weights stored (in, out), bf16 or f32
    b*_ref: (1, N*H)/(1, N*d) biases (f32)
    o_ref : (TB, K*N*d)    lane-dense output slab; chunk k is columns [k*ND,(k+1)*ND)
    """
    ND = x_ref.shape[1]
    K = dt_ref.shape[1]

    x32 = x_ref[...]                                   # keep f32 copy for the Euler add
    xm = x32.astype(w1_ref.dtype)                      # matmul operand (bf16 or f32)
    h = jnp.tanh(
        jnp.dot(xm, w1_ref[...], preferred_element_type=jnp.float32) + b1_ref[...]
    )
    f = (
        jnp.dot(h.astype(w2_ref.dtype), w2_ref[...], preferred_element_type=jnp.float32)
        + b2_ref[...]
    )
    dt = dt_ref[...]                                   # (TB, K)
    # out[r, k*ND:(k+1)*ND] = x[r] + dt[r, k] * f[r]  -- K unmasked full-width stores
    for k in range(K):
        o_ref[:, k * ND:(k + 1) * ND] = (x32 + dt[:, k:k + 1] * f).astype(o_ref.dtype)


def _vmem_plan(SB, K, ND, NH, w_bytes, row_tile=None):
    """Pick rows-of-S*B per grid step and a VMEM limit, sized per generation."""
    try:
        vmem_cap = pltpu.get_tpu_info().vmem_capacity_bytes
    except Exception:  # no TPU info available -> conservative default
        vmem_cap = 64 * 1024 * 1024
    # v5e/v6e: 128 MiB physical -> allow large tiles; v7x: 64 MiB -> ~half budget.
    vmem_limit = (96 << 20) if vmem_cap >= (100 << 20) else (44 << 20)

    ndp, nhp = _round_up(ND, 128), _round_up(NH, 128)
    dt_lanes = _round_up(K, 128)
    # weights + biases, double-buffered by the BlockSpec pipeline
    fixed = 2 * (w_bytes * (ND * nhp + NH * ndp) + 4 * 8 * (nhp + ndp))
    # x row + dt row + lane-dense output slab, double-buffered, all f32
    per_row = 2 * 4 * (ndp + dt_lanes + K * ND)
    budget = vmem_limit - (8 << 20)                    # headroom

    if budget - fixed < 8 * per_row:
        # TODO(synk): for large N the kron-packed weights scale O(N^2); a
        # node-group grid axis reusing the true (d,H)/(H,d) weights is needed.
        raise RuntimeError(
            "Block-diagonal packed weights do not fit the VMEM budget "
            f"(fixed={fixed} B, budget={budget} B); tile over node groups."
        )

    if row_tile is not None:
        return int(row_tile), vmem_limit
    if SB <= 8:
        return SB, vmem_limit

    tb = max(8, min(1024, (budget - fixed) // per_row))
    # Ensure >= 2 grid steps so both v7x TensorCores get work on the "parallel"
    # axis (extra step costs ~0.35 us on 1-TC parts -> harmless on v5e/v6e).
    tb = min(tb, _round_up(-(-SB // 2), 8))
    return max(8, (tb // 8) * 8), vmem_limit


def fused_transition(x, dt, w1bd, b1bd, w2bd, b2bd, row_tile=None):
    SB, ND = x.shape
    K = dt.shape[1]
    NH = w1bd.shape[1]
    w_bytes = jnp.dtype(w1bd.dtype).itemsize
    TB, vmem_limit = _vmem_plan(SB, K, ND, NH, w_bytes, row_tile)
    grid = (pl.cdiv(SB, TB),)
    return pl.pallas_call(
        _fused_kernel,
        out_shape=jax.ShapeDtypeStruct((SB, K * ND), jnp.float32),
        grid_spec=pltpu.PrefetchScalarGridSpec(
            num_scalar_prefetch=0,
            grid=grid,
            in_specs=[
                pl.BlockSpec((TB, ND), lambda i: (i, 0)),          # x rows
                pl.BlockSpec((TB, K), lambda i: (i, 0)),           # dt (lane-packed)
                pl.BlockSpec((ND, NH), lambda i: (0, 0)),          # W1 (block-diag)
                pl.BlockSpec((1, NH), lambda i: (0, 0)),           # b1
                pl.BlockSpec((NH, ND), lambda i: (0, 0)),          # W2 (block-diag)
                pl.BlockSpec((1, ND), lambda i: (0, 0)),           # b2
            ],
            out_specs=pl.BlockSpec((TB, K * ND), lambda i: (i, 0)),
        ),
        compiler_params=pltpu.CompilerParams(
            dimension_semantics=("parallel",),
            vmem_limit_bytes=vmem_limit,
        ),
    )(x, dt, w1bd, b1bd, w2bd, b2bd)


# ----------------------------------------------------------------------------
# NeuralTransitionFunction: param_count / set_param over nn.Linear-style layers
# ----------------------------------------------------------------------------
class NeuralTransitionFunction:
    def __init__(self, d, hidden, matmul_dtype=jnp.bfloat16):
        self.d = d
        self.hidden = hidden
        self.matmul_dtype = matmul_dtype          # bf16 operands, f32 accumulation
        # PyTorch nn.Linear layout: weight (out_features, in_features), bias (out,)
        self._layer_shapes = [((hidden, d), (hidden,)), ((d, hidden), (d,))]
        self._bd_cache = {}
        self.set_param(jnp.zeros((self.param_count(),), jnp.float32))

    def param_count(self) -> int:
        return sum(w[0] * w[1] + b[0] for w, b in self._layer_shapes)

    def set_param(self, param) -> None:
        param = jnp.ravel(param)
        assert param.size == self.param_count(), (
            f"The size of param ({param.size}) must equal param_count() "
            f"({self.param_count()})"
        )
        ptr, layers = 0, []
        for wshape, bshape in self._layer_shapes:
            wn, bn = wshape[0] * wshape[1], bshape[0]
            w = param[ptr : ptr + wn].reshape(wshape)
            b = param[ptr + wn : ptr + wn + bn].reshape(bshape)
            layers.append((w, b))
            ptr += wn + bn
        (w1, b1), (w2, b2) = layers
        # transpose to (in, out) so the kernel computes x @ W
        self.w1_t = jnp.asarray(w1.T, jnp.float32)
        self.b1 = jnp.asarray(b1, jnp.float32).reshape(1, -1)
        self.w2_t = jnp.asarray(w2.T, jnp.float32)
        self.b2 = jnp.asarray(b2, jnp.float32).reshape(1, -1)
        self._bd_cache = {}  # packed weights depend on params -> invalidate

    def _packed_weights(self, N):
        # Block-diagonal (over the N nodes) weights let the fused kernel run the
        # node-wise MLP as a single lane-dense (N*d)-wide matmul per S*B row:
        # contraction/output dims become multiples of 128 and all stores are
        # unmasked.  Off-diagonal zeros contribute exact zeros.  Weights are cast
        # to `matmul_dtype` (bf16 default) -> single-pass MXU, half the weight
        # HBM/VMEM; accumulation stays f32.
        if N not in self._bd_cache:
            eye = jnp.eye(N, dtype=jnp.float32)
            self._bd_cache[N] = (
                jnp.kron(eye, self.w1_t).astype(self.matmul_dtype),   # (N*d, N*H)
                jnp.tile(self.b1, (1, N)),                            # (1, N*H) f32
                jnp.kron(eye, self.w2_t).astype(self.matmul_dtype),   # (N*H, N*d)
                jnp.tile(self.b2, (1, N)),                            # (1, N*d) f32
            )
        return self._bd_cache[N]

    def forward(self, s, t, row_tile=None):
        S, B, N, d = s.shape
        assert d == self.d
        K = t.shape[-1] - 1                       # block_size
        SB, ND = S * B, N * d
        x = s.reshape(SB, ND).astype(jnp.float32)                    # lane-dense rows
        dt = (t[..., 1:] - t[..., :1]).astype(jnp.float32).reshape(SB, K)
        w1bd, b1bd, w2bd, b2bd = self._packed_weights(N)
        out = fused_transition(x, dt, w1bd, b1bd, w2bd, b2bd, row_tile=row_tile)
        # (SB, K*N*d) is contiguity-identical to (S, B*K, N, d) -> free reshape
        return out.reshape(S, B * K, N, d)


# ----------------------------------------------------------------------------
# Pure-JAX reference for verification
# ----------------------------------------------------------------------------
def reference(s, t, w1_t, b1, w2_t, b2):
    x = s.astype(jnp.float32)
    h = jnp.tanh(jnp.einsum("sbnd,dh->sbnh", x, w1_t) + b1[0])
    f = jnp.einsum("sbnh,hd->sbnd", h, w2_t) + b2[0]
    dt = t[..., 1:] - t[..., :1]                       # (S, B, K)
    out = x[:, :, None] + dt[:, :, :, None, None] * f[:, :, None]
    S, B, K, N, d = out.shape
    return out.reshape(S, B * K, N, d)


if __name__ == "__main__":
    S, B, N, d, hidden, block_size = 2, 8, 8, 32, 64, 4   # N*d = 256 (lane-dense)

    key = jax.random.PRNGKey(0)
    k1, k2, k3 = jax.random.split(key, 3)
    s = jax.random.normal(k1, (S, B, N, d), jnp.float32)
    # monotone time grid; first point is the latent state's temporal position
    t0 = jax.random.uniform(k2, (S, B, 1), jnp.float32)
    dts = jax.random.uniform(k3, (S, B, block_size), jnp.float32, 0.05, 0.2)
    t = jnp.concatenate([t0, t0 + jnp.cumsum(dts, axis=-1)], axis=-1)  # (S,B,block_size+1)

    param = 0.1 * jax.random.normal(jax.random.PRNGKey(1), (hidden * d + hidden + d * hidden + d,), jnp.float32)

    # Exact f32-matmul path (bit-level behaviour close to the reference).
    model_f32 = NeuralTransitionFunction(d, hidden, matmul_dtype=jnp.float32)
    model_f32.set_param(param)
    ref = reference(s, t, model_f32.w1_t, model_f32.b1, model_f32.w2_t, model_f32.b2)

    out_f32 = jax.block_until_ready(model_f32.forward(s, t))           # grid = (2,)
    assert out_f32.shape == (S, B * block_size, N, d)
    np.testing.assert_allclose(np.asarray(out_f32), np.asarray(ref), rtol=1e-4, atol=1e-4)

    # Single-tile grid exercise of the index maps (grid = (1,)).
    out_rt = jax.block_until_ready(model_f32.forward(s, t, row_tile=16))
    np.testing.assert_allclose(np.asarray(out_rt), np.asarray(ref), rtol=1e-4, atol=1e-4)

    # Default perf path: bf16 matmul operands, f32 accumulation (looser tolerance).
    model = NeuralTransitionFunction(d, hidden)
    model.set_param(param)
    out = jax.block_until_ready(model.forward(s, t))
    assert out.shape == (S, B * block_size, N, d)
    np.testing.assert_allclose(np.asarray(out), np.asarray(ref), rtol=2e-2, atol=2e-2)

    print("KERNEL_OK")
</pallas_src>

<mosaic_0001>
module attributes {stable_mosaic.version = 11 : i64} {
  func.func @_fused_kernel(%arg0: i32, %arg1: memref<8x256xf32, #tpu.memory_space<vmem>>, %arg2: memref<8x4xf32, #tpu.memory_space<vmem>>, %arg3: memref<256x512xf32, #tpu.memory_space<vmem>>, %arg4: memref<1x512xf32, #tpu.memory_space<vmem>>, %arg5: memref<512x256xf32, #tpu.memory_space<vmem>>, %arg6: memref<1x256xf32, #tpu.memory_space<vmem>>, %arg7: memref<8x1024xf32, #tpu.memory_space<vmem>>) attributes {dimension_semantics = [#tpu.dimension_semantics<parallel>], iteration_bounds = array<i64: 2>, scalar_prefetch = 0 : i64, scratch_operands = 0 : i64, tpu.core_type = #tpu.core_type<tc>, window_params = [{transform_indices = @transform_0, window_bounds = array<i64: 8, 256>}, {transform_indices = @transform_1, window_bounds = array<i64: 8, 4>}, {pipeline_mode = #tpu.pipeline_mode<synchronous>, transform_indices = @transform_2, window_bounds = array<i64: 256, 512>}, {pipeline_mode = #tpu.pipeline_mode<synchronous>, transform_indices = @transform_3, window_bounds = array<i64: 1, 512>}, {pipeline_mode = #tpu.pipeline_mode<synchronous>, transform_indices = @transform_4, window_bounds = array<i64: 512, 256>}, {pipeline_mode = #tpu.pipeline_mode<synchronous>, transform_indices = @transform_5, window_bounds = array<i64: 1, 256>}, {transform_indices = @transform_6, window_bounds = array<i64: 8, 1024>}]} {
    %c0 = arith.constant 0 : index
    %c0_0 = arith.constant 0 : index
    %0 = vector.load %arg1[%c0, %c0_0] : memref<8x256xf32, #tpu.memory_space<vmem>>, vector<8x256xf32>
    %c0_1 = arith.constant 0 : index
    %c0_2 = arith.constant 0 : index
    %1 = vector.load %arg3[%c0_1, %c0_2] : memref<256x512xf32, #tpu.memory_space<vmem>>, vector<256x512xf32>
    %cst = arith.constant dense<0.000000e+00> : vector<8x512xf32>
    %2 = tpu.matmul %0, %1, %cst {dimension_numbers = #tpu.dot_dimension_numbers<[1], [0], [0], [1], [0, 0, 1, 1], [], []>} : vector<8x256xf32>, vector<256x512xf32>, vector<8x512xf32> -> vector<8x512xf32>
    %c0_3 = arith.constant 0 : index
    %c0_4 = arith.constant 0 : index
    %3 = vector.load %arg4[%c0_3, %c0_4] : memref<1x512xf32, #tpu.memory_space<vmem>>, vector<1x512xf32>
    %4 = vector.broadcast %3 : vector<1x512xf32> to vector<8x512xf32>
    %5 = arith.addf %2, %4 : vector<8x512xf32>
    %6 = math.tanh %5 : vector<8x512xf32>
    %c0_5 = arith.constant 0 : index
    %c0_6 = arith.constant 0 : index
    %7 = vector.load %arg5[%c0_5, %c0_6] : memref<512x256xf32, #tpu.memory_space<vmem>>, vector<512x256xf32>
    %cst_7 = arith.constant dense<0.000000e+00> : vector<8x256xf32>
    %8 = tpu.matmul %6, %7, %cst_7 {dimension_numbers = #tpu.dot_dimension_numbers<[1], [0], [0], [1], [0, 0, 1, 1], [], []>} : vector<8x512xf32>, vector<512x256xf32>, vector<8x256xf32> -> vector<8x256xf32>
    %c0_8 = arith.constant 0 : index
    %c0_9 = arith.constant 0 : index
    %9 = vector.load %arg6[%c0_8, %c0_9] : memref<1x256xf32, #tpu.memory_space<vmem>>, vector<1x256xf32>
    %10 = vector.broadcast %9 : vector<1x256xf32> to vector<8x256xf32>
    %11 = arith.addf %8, %10 : vector<8x256xf32>
    %c0_10 = arith.constant 0 : index
    %c0_11 = arith.constant 0 : index
    %12 = vector.load %arg2[%c0_10, %c0_11] : memref<8x4xf32, #tpu.memory_space<vmem>>, vector<8x4xf32>
    %13 = vector.extract_strided_slice %12 {offsets = [0, 0], sizes = [8, 1], strides = [1, 1]} : vector<8x4xf32> to vector<8x1xf32>
    %14 = vector.broadcast %13 : vector<8x1xf32> to vector<8x256xf32>
    %15 = arith.mulf %14, %11 : vector<8x256xf32>
    %16 = arith.addf %0, %15 : vector<8x256xf32>
    %c0_12 = arith.constant 0 : index
    %c0_13 = arith.constant 0 : index
    %17 = vector.load %arg7[%c0_12, %c0_13] : memref<8x1024xf32, #tpu.memory_space<vmem>>, vector<8x256xf32>
    tpu.vector_store %arg7[%c0_12, %c0_13], %16 {strides = array<i32>} : memref<8x1024xf32, #tpu.memory_space<vmem>>, vector<8x256xf32>,
    %18 = vector.extract_strided_slice %12 {offsets = [0, 1], sizes = [8, 1], strides = [1, 1]} : vector<8x4xf32> to vector<8x1xf32>
    %19 = vector.broadcast %18 : vector<8x1xf32> to vector<8x256xf32>
    %20 = arith.mulf %19, %11 : vector<8x256xf32>
    %21 = arith.addf %0, %20 : vector<8x256xf32>
    %c0_14 = arith.constant 0 : index
    %c256 = arith.constant 256 : index
    %22 = vector.load %arg7[%c0_14, %c256] : memref<8x1024xf32, #tpu.memory_space<vmem>>, vector<8x256xf32>
    tpu.vector_store %arg7[%c0_14, %c256], %21 {strides = array<i32>} : memref<8x1024xf32, #tpu.memory_space<vmem>>, vector<8x256xf32>,
    %23 = vector.extract_strided_slice %12 {offsets = [0, 2], sizes = [8, 1], strides = [1, 1]} : vector<8x4xf32> to vector<8x1xf32>
    %24 = vector.broadcast %23 : vector<8x1xf32> to vector<8x256xf32>
    %25 = arith.mulf %24, %11 : vector<8x256xf32>
    %26 = arith.addf %0, %25 : vector<8x256xf32>
    %c0_15 = arith.constant 0 : index
    %c512 = arith.constant 512 : index
    %27 = vector.load %arg7[%c0_15, %c512] : memref<8x1024xf32, #tpu.memory_space<vmem>>, vector<8x256xf32>
    tpu.vector_store %arg7[%c0_15, %c512], %26 {strides = array<i32>} : memref<8x1024xf32, #tpu.memory_space<vmem>>, vector<8x256xf32>,
    %28 = vector.extract_strided_slice %12 {offsets = [0, 3], sizes = [8, 1], strides = [1, 1]} : vector<8x4xf32> to vector<8x1xf32>
    %29 = vector.broadcast %28 : vector<8x1xf32> to vector<8x256xf32>
    %30 = arith.mulf %29, %11 : vector<8x256xf32>
    %31 = arith.addf %0, %30 : vector<8x256xf32>
    %c0_16 = arith.constant 0 : index
    %c768 = arith.constant 768 : index
    %32 = vector.load %arg7[%c0_16, %c768] : memref<8x1024xf32, #tpu.memory_space<vmem>>, vector<8x256xf32>
    tpu.vector_store %arg7[%c0_16, %c768], %31 {strides = array<i32>} : memref<8x1024xf32, #tpu.memory_space<vmem>>, vector<8x256xf32>,
    return
  }
  func.func @transform_0(%arg0: i32) -> (i32, i32) {
    %c0_i32 = arith.constant 0 : i32
    %c0_i32_0 = arith.constant 0 : i32
    return %arg0, %c0_i32 : i32, i32
  }
  func.func @transform_1(%arg0: i32) -> (i32, i32) {
    %c0_i32 = arith.constant 0 : i32
    %c0_i32_0 = arith.constant 0 : i32
    return %arg0, %c0_i32 : i32, i32
  }
  func.func @transform_2(%arg0: i32) -> (i32, i32) {
    %c0_i32 = arith.constant 0 : i32
    %c0_i32_0 = arith.constant 0 : i32
    %c0_i32_1 = arith.constant 0 : i32
    return %c0_i32, %c0_i32_0 : i32, i32
  }
  func.func @transform_3(%arg0: i32) -> (i32, i32) {
    %c0_i32 = arith.constant 0 : i32
    %c0_i32_0 = arith.constant 0 : i32
    %c0_i32_1 = arith.constant 0 : i32
    return %c0_i32, %c0_i32_0 : i32, i32
  }
  func.func @transform_4(%arg0: i32) -> (i32, i32) {
    %c0_i32 = arith.constant 0 : i32
    %c0_i32_0 = arith.constant 0 : i32
    %c0_i32_1 = arith.constant 0 : i32
    return %c0_i32, %c0_i32_0 : i32, i32
  }
  func.func @transform_5(%arg0: i32) -> (i32, i32) {
    %c0_i32 = arith.constant 0 : i32
    %c0_i32_0 = arith.constant 0 : i32
    %c0_i32_1 = arith.constant 0 : i32
    return %c0_i32, %c0_i32_0 : i32, i32
  }
  func.func @transform_6(%arg0: i32) -> (i32, i32) {
    %c0_i32 = arith.constant 0 : i32
    %c0_i32_0 = arith.constant 0 : i32
    return %arg0, %c0_i32 : i32, i32
  }
}

</mosaic_0001>

<llo_original>
// kernel: tpu_custom_call.1
$region0: #{tpu_custom_call.1}
  #allocation0 [shape = 'u32[]', space=smem, size = 0x4, offset = 0x4, fixed_abs, tag = 'smem constant byte address 0x4 - core index']
  #allocation1 [shape = 'u32[144,128]{1,0:T(1,128)}', space=vmem, size = 0x12000, scoped, tag = 'internal scratch']
  %s0 = inlined_call_operand.hbm [shape: f32[16,256], index: 0, kind: input, shape index: {}]
  %s1 = inlined_call_operand.vmem [shape: f32[16,4], index: 1, kind: input, shape index: {}]
  %s2 = inlined_call_operand.hbm [shape: f32[256,512], index: 2, kind: input, shape index: {}]
  %s3 = inlined_call_operand.vmem [shape: f32[1,512], index: 3, kind: input, shape index: {}]
  %s4 = inlined_call_operand.hbm [shape: f32[512,256], index: 4, kind: input, shape index: {}]
  %s5 = inlined_call_operand.vmem [shape: f32[1,256], index: 5, kind: input, shape index: {}]
  %s6 = inlined_call_operand.hbm [shape: f32[16,1024], index: 6, kind: output, shape index: {}]
  %s7 = sld [smem:[#allocation0]]
  $region69: #{tpu_custom_call.1} parent=0
    _
  %s9 = ssub.s32 1, %s7
  %s10 = scalar_select 0, %s9, %s7
  $region1: #{tpu_custom_call.1} parent=0
    #allocation2 [shape = 'u8[16384]{0}', space=vmem, size = 0x4000, scoped, tag = 'input window, operand 0']
    #allocation3 [shape = 's32[2]{0}', space=sflag, size = 0x8, scoped, tag = 'scoped memory for tpu_custom_call.1']
    #allocation4 [shape = 's32[2]{0}', space=sflag, size = 0x8, scoped, tag = 'scoped memory for tpu_custom_call.1']
    #allocation5 [shape = 'u8[524288]{0}', space=vmem, size = 0x80000, scoped, tag = 'input window, operand 2, single buffered']
    #allocation6 [shape = 's32[1]{0}', space=sflag, size = 0x4, scoped, tag = 'scoped memory for tpu_custom_call.1']
    #allocation7 [shape = 'u8[524288]{0}', space=vmem, size = 0x80000, scoped, tag = 'input window, operand 4, single buffered']
    #allocation8 [shape = 'u8[65536]{0}', space=vmem, size = 0x10000, scoped, tag = 'output window, operand 0']
    %11 = vsyncpa [#allocation3], 0
    %s12 = scalar_lea.sflag [#allocation3], 1
    %13 = vsyncpa %s12, 0
    %14 = vsyncpa [#allocation6], 0
    %15 = vsyncpa [#allocation4], 0
    %s16 = scalar_lea.sflag [#allocation4], 1
    %17 = vsyncpa %s16, 0
    loop: start=0, step=1, limit=4
    $region2: #{tpu_custom_call.1} parent=1 // loop_pre_header
      _
    $region3: #{tpu_custom_call.1} parent=1 // loop_header
      %s19 = sphi 0, %s23
      %p20 = scmp.ge.s32.totalorder %s19, 4
      %s29 = sphi 0, %s31
      %s32 = sphi 0, %s29
      %s33 = sphi 0, %s32
      %s49 = sphi 0, %s33
      %s55 = sphi 0, %s57
      %s58 = sphi 0, %s55
      %s59 = sphi 0, %s58
      %s75 = sphi 0, %s59
      %s79 = sphi 0, %s79
      %s81 = sphi 0, %s79
      %s82 = sphi 0, %s81
      %s96 = sphi 0, %s82
      %s100 = sphi 0, %s100
      %s102 = sphi 0, %s100
      %s103 = sphi 0, %s102
      %s117 = sphi 0, %s103
      %s121 = sphi 0, %s121
      %s123 = sphi 0, %s121
      %s124 = sphi 0, %s123
      %s138 = sphi 0, %s124
      %s142 = sphi 0, %s142
      %s144 = sphi 0, %s142
      %s145 = sphi 0, %s144
      %s159 = sphi 0, %s145
      %s165 = sphi 0, %s167
      %s168 = sphi 0, %s165
      %s169 = sphi 0, %s168
      %s185 = sphi 0, %s169
    $region4: #{tpu_custom_call.1} parent=1 // loop_header_branch
      %22 = sbr.rel (%p20) target = $region8
    $region5: #{tpu_custom_call.1} parent=1 // loop_body
      %s24 = ssub.s32 %s19, 1
      %s25 = ssub.s32 %s19, 2
      %s26 = sadd.s32 %s19, 1
      %s27 = ssub.s32 %s19, %s26
      %p28 = scmp.eq.s32.totalorder %s27, 0
      %s30 = sadd.s32 %s29, 1
      %s31 = scalar_select %p28, %s29, %s30
      %p34 = pneg %p28
      %p35 = scmp.eq.s32.totalorder %s19, 1
      %p36 = por %p34, %p35
      %p37 = scmp.ne.s32.totalorder %s29, %s32
      %p38 = scmp.eq.s32.totalorder %s19, 0
      %p39 = por %p37, %p38
      %p40 = scmp.ne.s32.totalorder %s29, %s32
      %p41 = scmp.eq.s32.totalorder %s24, 1
      %p42 = por %p40, %p41
      %p43 = scmp.ne.s32.totalorder %s32, %s33
      %p44 = scmp.eq.s32.totalorder %s24, 0
      %p45 = por %p43, %p44
      %p46 = scmp.ne.s32.totalorder %s32, %s33
      %p47 = scmp.eq.s32.totalorder %s25, 1
      %p48 = por %p46, %p47
      %p50 = scmp.ne.s32.totalorder %s33, %s49
      %p51 = scmp.eq.s32.totalorder %s25, 0
      %p52 = por %p50, %p51
      %s53 = ssub.s32 %s19, %s26
      %p54 = scmp.eq.s32.totalorder %s53, 0
      %s56 = sadd.s32 %s55, 1
      %s57 = scalar_select %p54, %s55, %s56
      %p60 = pneg %p54
      %p61 = scmp.eq.s32.totalorder %s19, 1
      %p62 = por %p60, %p61
      %p63 = scmp.ne.s32.totalorder %s55, %s58
      %p64 = scmp.eq.s32.totalorder %s19, 0
      %p65 = por %p63, %p64
      %p66 = scmp.ne.s32.totalorder %s55, %s58
      %p67 = scmp.eq.s32.totalorder %s24, 1
      %p68 = por %p66, %p67
      %p69 = scmp.ne.s32.totalorder %s58, %s59
      %p70 = scmp.eq.s32.totalorder %s24, 0
      %p71 = por %p69, %p70
      %p72 = scmp.ne.s32.totalorder %s58, %s59
      %p73 = scmp.eq.s32.totalorder %s25, 1
      %p74 = por %p72, %p73
      %p76 = scmp.ne.s32.totalorder %s59, %s75
      %p77 = scmp.eq.s32.totalorder %s25, 0
      %p78 = por %p76, %p77
      %s80 = sadd.s32 %s79, 1
      %p83 = scmp.eq.s32.totalorder %s19, 1
      %p84 = scmp.ne.s32.totalorder %s79, %s81
      %p85 = scmp.eq.s32.totalorder %s19, 0
      %p86 = por %p84, %p85
      %p87 = scmp.ne.s32.totalorder %s79, %s81
      %p88 = scmp.eq.s32.totalorder %s24, 1
      %p89 = por %p87, %p88
      %p90 = scmp.ne.s32.totalorder %s81, %s82
      %p91 = scmp.eq.s32.totalorder %s24, 0
      %p92 = por %p90, %p91
      %p93 = scmp.ne.s32.totalorder %s81, %s82
      %p94 = scmp.eq.s32.totalorder %s25, 1
      %p95 = por %p93, %p94
      %p97 = scmp.ne.s32.totalorder %s82, %s96
      %p98 = scmp.eq.s32.totalorder %s25, 0
      %p99 = por %p97, %p98
      %s101 = sadd.s32 %s100, 1
      %p104 = scmp.eq.s32.totalorder %s19, 1
      %p105 = scmp.ne.s32.totalorder %s100, %s102
      %p106 = scmp.eq.s32.totalorder %s19, 0
      %p107 = por %p105, %p106
      %p108 = scmp.ne.s32.totalorder %s100, %s102
      %p109 = scmp.eq.s32.totalorder %s24, 1
      %p110 = por %p108, %p109
      %p111 = scmp.ne.s32.totalorder %s102, %s103
      %p112 = scmp.eq.s32.totalorder %s24, 0
      %p113 = por %p111, %p112
      %p114 = scmp.ne.s32.totalorder %s102, %s103
      %p115 = scmp.eq.s32.totalorder %s25, 1
      %p116 = por %p114, %p115
      %p118 = scmp.ne.s32.totalorder %s103, %s117
      %p119 = scmp.eq.s32.totalorder %s25, 0
      %p120 = por %p118, %p119
      %s122 = sadd.s32 %s121, 1
      %p125 = scmp.eq.s32.totalorder %s19, 1
      %p126 = scmp.ne.s32.totalorder %s121, %s123
      %p127 = scmp.eq.s32.totalorder %s19, 0
      %p128 = por %p126, %p127
      %p129 = scmp.ne.s32.totalorder %s121, %s123
      %p130 = scmp.eq.s32.totalorder %s24, 1
      %p131 = por %p129, %p130
      %p132 = scmp.ne.s32.totalorder %s123, %s124
      %p133 = scmp.eq.s32.totalorder %s24, 0
      %p134 = por %p132, %p133
      %p135 = scmp.ne.s32.totalorder %s123, %s124
      %p136 = scmp.eq.s32.totalorder %s25, 1
      %p137 = por %p135, %p136
      %p139 = scmp.ne.s32.totalorder %s124, %s138
      %p140 = scmp.eq.s32.totalorder %s25, 0
      %p141 = por %p139, %p140
      %s143 = sadd.s32 %s142, 1
      %p146 = scmp.eq.s32.totalorder %s19, 1
      %p147 = scmp.ne.s32.totalorder %s142, %s144
      %p148 = scmp.eq.s32.totalorder %s19, 0
      %p149 = por %p147, %p148
      %p150 = scmp.ne.s32.totalorder %s142, %s144
      %p151 = scmp.eq.s32.totalorder %s24, 1
      %p152 = por %p150, %p151
      %p153 = scmp.ne.s32.totalorder %s144, %s145
      %p154 = scmp.eq.s32.totalorder %s24, 0
      %p155 = por %p153, %p154
      %p156 = scmp.ne.s32.totalorder %s144, %s145
      %p157 = scmp.eq.s32.totalorder %s25, 1
      %p158 = por %p156, %p157
      %p160 = scmp.ne.s32.totalorder %s145, %s159
      %p161 = scmp.eq.s32.totalorder %s25, 0
      %p162 = por %p160, %p161
      %s163 = ssub.s32 %s19, %s26
      %p164 = scmp.eq.s32.totalorder %s163, 0
      %s166 = sadd.s32 %s165, 1
      %s167 = scalar_select %p164, %s165, %s166
      %p170 = pneg %p164
      %p171 = scmp.eq.s32.totalorder %s19, 1
      %p172 = por %p170, %p171
      %p173 = scmp.ne.s32.totalorder %s165, %s168
      %p174 = scmp.eq.s32.totalorder %s19, 0
      %p175 = por %p173, %p174
      %p176 = scmp.ne.s32.totalorder %s165, %s168
      %p177 = scmp.eq.s32.totalorder %s24, 1
      %p178 = por %p176, %p177
      %p179 = scmp.ne.s32.totalorder %s168, %s169
      %p180 = scmp.eq.s32.totalorder %s24, 0
      %p181 = por %p179, %p180
      %p182 = scmp.ne.s32.totalorder %s168, %s169
      %p183 = scmp.eq.s32.totalorder %s25, 1
      %p184 = por %p182, %p183
      %p186 = scmp.ne.s32.totalorder %s169, %s185
      %p187 = scmp.eq.s32.totalorder %s25, 0
      %p188 = por %p186, %p187
      %p189 = scmp.le.s32.totalorder 1, %s19
      %p190 = scmp.lt.s32.totalorder %s19, 3
      %p191 = pnand %p189, %p190
      %p192 = pneg %p191
      // Predicated region
      $region9: #{tpu_custom_call.1} parent=5 // pred_check
        _
      $region10: #{tpu_custom_call.1} parent=5 // pred_check_branch
        %194 = sbr.rel (%p191) target = $region12
      $region11: #{tpu_custom_call.1} parent=5 // pred_region
        %s195 = ssub.s32 %s19, 1
        // Predicated region
        $region13: #{tpu_custom_call.1} parent=11 // pred_check
          %p196 = pneg %p92
        $region14: #{tpu_custom_call.1} parent=11 // pred_check_branch
          %198 = sbr.rel (%p196) target = $region16
        $region15: #{tpu_custom_call.1} parent=11 // pred_region
          %s200 = ssub.s32 16384, 16384
          %201 = vsyncadd [#allocation6], %s200
          %s202 = sshll.u32 [#allocation5], 4
          %s203 = int_to_ptr.vmem [resolvable:$true] %s202
          %208 = dma.hbm_to_vmem [thread:$0]  %s2, 16384, %s203, [#allocation6], 512, 512, 32
        $region16: #{tpu_custom_call.1} parent=11 // pred_fallthru
          _
        // Predicated region
        $region17: #{tpu_custom_call.1} parent=11 // pred_check
          %p209 = pneg %p113
        $region18: #{tpu_custom_call.1} parent=11 // pred_check_branch
          %211 = sbr.rel (%p209) target = $region20
        $region19: #{tpu_custom_call.1} parent=11 // pred_region
          _
        $region20: #{tpu_custom_call.1} parent=11 // pred_fallthru
          _
        // Predicated region
        $region21: #{tpu_custom_call.1} parent=11 // pred_check
          %p212 = pneg %p134
        $region22: #{tpu_custom_call.1} parent=11 // pred_check_branch
          %214 = sbr.rel (%p212) target = $region24
        $region23: #{tpu_custom_call.1} parent=11 // pred_region
          %s216 = ssub.s32 16384, 16384
          %217 = vsyncadd [#allocation6], %s216
          %s218 = sshll.u32 [#allocation7], 4
          %s219 = int_to_ptr.vmem [resolvable:$true] %s218
          %224 = dma.hbm_to_vmem [thread:$0]  %s4, 16384, %s219, [#allocation6], 256, 256, 16
        $region24: #{tpu_custom_call.1} parent=11 // pred_fallthru
          _
        // Predicated region
        $region25: #{tpu_custom_call.1} parent=11 // pred_check
          %p225 = pneg %p155
        $region26: #{tpu_custom_call.1} parent=11 // pred_check_branch
          %227 = sbr.rel (%p225) target = $region28
        $region27: #{tpu_custom_call.1} parent=11 // pred_region
          _
        $region28: #{tpu_custom_call.1} parent=11 // pred_fallthru
          _
      $region12: #{tpu_custom_call.1} parent=5 // pred_fallthru
        _
      %p228 = scmp.lt.s32.totalorder %s19, 2
      // Predicated region
      $region29: #{tpu_custom_call.1} parent=5 // pred_check
        %p229 = pneg %p228
      $region30: #{tpu_custom_call.1} parent=5 // pred_check_branch
        %231 = sbr.rel (%p229) target = $region32
      $region31: #{tpu_custom_call.1} parent=5 // pred_region
        // Predicated region
        $region33: #{tpu_custom_call.1} parent=31 // pred_check
          %p232 = pneg %p39
        $region34: #{tpu_custom_call.1} parent=31 // pred_check_branch
          %234 = sbr.rel (%p232) target = $region36
        $region35: #{tpu_custom_call.1} parent=31 // pred_region
          %s235 = sand.u32 %s29, 1
          %s236 = scalar_lea.sflag [#allocation3], %s235
          %s237 = sand.u32 %s29, 1
          %s238 = smul.addr %s237, 16
          %s239 = scalar_lea.vmem [#allocation2], %s238
          %s241 = ssub.s32 256, 256
          %242 = vsyncadd %s236, %s241
          %s243 = smul.addr %s19, 2
          %s244 = smul.addr %s243, 128
          %s245 = scalar_lea.hbm %s0, %s244
          %s247 = sshll.u32 %s239, 4
          %s248 = int_to_ptr.vmem [resolvable:$true] %s247
          %250 = dma.hbm_to_vmem [thread:$0]  %s245, 256, %s248, %s236
        $region36: #{tpu_custom_call.1} parent=31 // pred_fallthru
          _
        // Predicated region
        $region37: #{tpu_custom_call.1} parent=31 // pred_check
          %p251 = pneg %p65
        $region38: #{tpu_custom_call.1} parent=31 // pred_check_branch
          %253 = sbr.rel (%p251) target = $region40
        $region39: #{tpu_custom_call.1} parent=31 // pred_region
          %p254 = scmp.lt.s32.totalorder %s19, 1
          %s255 = scalar_select %p254, %s19, 1
          %s256 = smul.addr %s255, 8
          %s257 = scalar_lea.vmem %s1, %s256
        $region40: #{tpu_custom_call.1} parent=31 // pred_fallthru
          _
      $region32: #{tpu_custom_call.1} parent=5 // pred_fallthru
        _
      %p258 = scmp.le.s32.totalorder 1, %s19
      %p259 = scmp.lt.s32.totalorder %s19, 3
      %p260 = pnand %p258, %p259
      %p261 = pneg %p260
      // Predicated region
      $region41: #{tpu_custom_call.1} parent=5 // pred_check
        _
      $region42: #{tpu_custom_call.1} parent=5 // pred_check_branch
        %263 = sbr.rel (%p260) target = $region44
      $region43: #{tpu_custom_call.1} parent=5 // pred_region
        %s264 = ssub.s32 %s19, 1
        %s265 = sand.u32 %s32, 1
        %s266 = scalar_lea.sflag [#allocation3], %s265
        %s267 = sand.u32 %s32, 1
        %s268 = smul.addr %s267, 16
        %s269 = scalar_lea.vmem [#allocation2], %s268
        // Predicated region
        $region45: #{tpu_custom_call.1} parent=43 // pred_check
          %p270 = pneg %p45
        $region46: #{tpu_custom_call.1} parent=43 // pred_check_branch
          %272 = sbr.rel (%p270) target = $region48
        $region47: #{tpu_custom_call.1} parent=43 // pred_region
          %273 = dma.done %s266, 256
        $region48: #{tpu_custom_call.1} parent=43 // pred_fallthru
          _
        // Predicated region
        $region49: #{tpu_custom_call.1} parent=43 // pred_check
          %p274 = pneg %p92
        $region50: #{tpu_custom_call.1} parent=43 // pred_check_branch
          %276 = sbr.rel (%p274) target = $region52
        $region51: #{tpu_custom_call.1} parent=43 // pred_region
          %277 = dma.done [#allocation6], 16384
        $region52: #{tpu_custom_call.1} parent=43 // pred_fallthru
          _
        // Predicated region
        $region53: #{tpu_custom_call.1} parent=43 // pred_check
          %p278 = pneg %p134
        $region54: #{tpu_custom_call.1} parent=43 // pred_check_branch
          %280 = sbr.rel (%p278) target = $region56
        $region55: #{tpu_custom_call.1} parent=43 // pred_region
          %281 = dma.done [#allocation6], 16384
        $region56: #{tpu_custom_call.1} parent=43 // pred_fallthru
          _
        %s282 = sand.u32 %s32, 1
        %s283 = scalar_lea.sflag [#allocation3], %s282
        %s284 = sand.u32 %s32, 1
        %s285 = smul.addr %s284, 16
        %s286 = scalar_lea.vmem [#allocation2], %s285
        %p287 = pneg %p45
        %p288 = pneg %p42
        %p289 = scmp.lt.s32.totalorder %s24, 1
        %s290 = scalar_select %p289, %s24, 1
        %s291 = smul.addr %s290, 8
        %s292 = scalar_lea.vmem %s1, %s291
        %p293 = pneg %p71
        %p294 = pneg %p68
        %p295 = pneg %p92
        %p296 = pneg %p89
        %p297 = pneg %p113
        %p298 = pneg %p110
        %p299 = pneg %p134
        %p300 = pneg %p131
        %p301 = pneg %p155
        %p302 = pneg %p152
        %p303 = pneg %p181
        %p304 = pneg %p178
        %s305 = sand.u32 %s168, 1
        %s306 = scalar_lea.sflag [#allocation4], %s305
        %s307 = sand.u32 %s168, 1
        %s308 = smul.addr %s307, 64
        %s309 = scalar_lea.vmem [#allocation8], %s308
        %p310 = scmp.lt.s32.totalorder %s24, 1
        %s311 = scalar_select %p310, %s24, 1
        %s312 = smul.addr %s311, 8
        %s313 = scalar_lea.vmem %s1, %s312
        %v314 = vld [vmem:[%s269] sm:$0xff]
        %v315 = vld [vmem:[%s269 + $0x8] sm:$0xff]
        %v316 = vld [vmem:[#allocation5] sm:$0xff]
        %v317 = vld [vmem:[#allocation5 + $0x8] sm:$0xff]
        %v318 = vld [vmem:[#allocation5 + $0x10] sm:$0xff]
        %v319 = vld [vmem:[#allocation5 + $0x18] sm:$0xff]
        %v320 = vld [vmem:[#allocation5 + $0x20] sm:$0xff]
        %v321 = vld [vmem:[#allocation5 + $0x28] sm:$0xff]
        %v322 = vld [vmem:[#allocation5 + $0x30] sm:$0xff]
        %v323 = vld [vmem:[#allocation5 + $0x38] sm:$0xff]
        %v324 = vld [vmem:[#allocation5 + $0x40] sm:$0xff]
        %v325 = vld [vmem:[#allocation5 + $0x48] sm:$0xff]
        %v326 = vld [vmem:[#allocation5 + $0x50] sm:$0xff]
        %v327 = vld [vmem:[#allocation5 + $0x58] sm:$0xff]
        %v328 = vld [vmem:[#allocation5 + $0x60] sm:$0xff]
        %v329 = vld [vmem:[#allocation5 + $0x68] sm:$0xff]
        %v330 = vld [vmem:[#allocation5 + $0x70] sm:$0xff]
        %v331 = vld [vmem:[#allocation5 + $0x78] sm:$0xff]
        %v332 = vld [vmem:[#allocation5 + $0x80] sm:$0xff]
        %v333 = vld [vmem:[#allocation5 + $0x88] sm:$0xff]
        %v334 = vld [vmem:[#allocation5 + $0x90] sm:$0xff]
        %v335 = vld [vmem:[#allocation5 + $0x98] sm:$0xff]
        %v336 = vld [vmem:[#allocation5 + $0xa0] sm:$0xff]
        %v337 = vld [vmem:[#allocation5 + $0xa8] sm:$0xff]
        %v338 = vld [vmem:[#allocation5 + $0xb0] sm:$0xff]
        %v339 = vld [vmem:[#allocation5 + $0xb8] sm:$0xff]
        %v340 = vld [vmem:[#allocation5 + $0xc0] sm:$0xff]
        %v341 = vld [vmem:[#allocation5 + $0xc8] sm:$0xff]
        %v342 = vld [vmem:[#allocation5 + $0xd0] sm:$0xff]
        %v343 = vld [vmem:[#allocation5 + $0xd8] sm:$0xff]
        %v344 = vld [vmem:[#allocation5 + $0xe0] sm:$0xff]
        %v345 = vld [vmem:[#allocation5 + $0xe8] sm:$0xff]
        %v346 = vld [vmem:[#allocation5 + $0xf0] sm:$0xff]
        %v347 = vld [vmem:[#allocation5 + $0xf8] sm:$0xff]
        %v348 = vld [vmem:[#allocation5 + $0x100] sm:$0xff]
        %v349 = vld [vmem:[#allocation5 + $0x108] sm:$0xff]
        %v350 = vld [vmem:[#allocation5 + $0x110] sm:$0xff]
        %v351 = vld [vmem:[#allocation5 + $0x118] sm:$0xff]
        %v352 = vld [vmem:[#allocation5 + $0x120] sm:$0xff]
        %v353 = vld [vmem:[#allocation5 + $0x128] sm:$0xff]
        %v354 = vld [vmem:[#allocation5 + $0x130] sm:$0xff]
        %v355 = vld [vmem:[#allocation5 + $0x138] sm:$0xff]
        %v356 = vld [vmem:[#allocation5 + $0x140] sm:$0xff]
        %v357 = vld [vmem:[#allocation5 + $0x148] sm:$0xff]
        %v358 = vld [vmem:[#allocation5 + $0x150] sm:$0xff]
        %v359 = vld [vmem:[#allocation5 + $0x158] sm:$0xff]
        %v360 = vld [vmem:[#allocation5 + $0x160] sm:$0xff]
        %v361 = vld [vmem:[#allocation5 + $0x168] sm:$0xff]
        %v362 = vld [vmem:[#allocation5 + $0x170] sm:$0xff]
        %v363 = vld [vmem:[#allocation5 + $0x178] sm:$0xff]
        %v364 = vld [vmem:[#allocation5 + $0x180] sm:$0xff]
        %v365 = vld [vmem:[#allocation5 + $0x188] sm:$0xff]
        %v366 = vld [vmem:[#allocation5 + $0x190] sm:$0xff]
        %v367 = vld [vmem:[#allocation5 + $0x198] sm:$0xff]
        %v368 = vld [vmem:[#allocation5 + $0x1a0] sm:$0xff]
        %v369 = vld [vmem:[#allocation5 + $0x1a8] sm:$0xff]
        %v370 = vld [vmem:[#allocation5 + $0x1b0] sm:$0xff]
        %v371 = vld [vmem:[#allocation5 + $0x1b8] sm:$0xff]
        %v372 = vld [vmem:[#allocation5 + $0x1c0] sm:$0xff]
        %v373 = vld [vmem:[#allocation5 + $0x1c8] sm:$0xff]
        %v374 = vld [vmem:[#allocation5 + $0x1d0] sm:$0xff]
        %v375 = vld [vmem:[#allocation5 + $0x1d8] sm:$0xff]
        %v376 = vld [vmem:[#allocation5 + $0x1e0] sm:$0xff]
        %v377 = vld [vmem:[#allocation5 + $0x1e8] sm:$0xff]
        %v378 = vld [vmem:[#allocation5 + $0x1f0] sm:$0xff]
        %v379 = vld [vmem:[#allocation5 + $0x1f8] sm:$0xff]
        %v380 = vld [vmem:[#allocation5 + $0x200] sm:$0xff]
        %v381 = vld [vmem:[#allocation5 + $0x208] sm:$0xff]
        %v382 = vld [vmem:[#allocation5 + $0x210] sm:$0xff]
        %v383 = vld [vmem:[#allocation5 + $0x218] sm:$0xff]
        %v384 = vld [vmem:[#allocation5 + $0x220] sm:$0xff]
        %v385 = vld [vmem:[#allocation5 + $0x228] sm:$0xff]
        %v386 = vld [vmem:[#allocation5 + $0x230] sm:$0xff]
        %v387 = vld [vmem:[#allocation5 + $0x238] sm:$0xff]
        %v388 = vld [vmem:[#allocation5 + $0x240] sm:$0xff]
        %v389 = vld [vmem:[#allocation5 + $0x248] sm:$0xff]
        %v390 = vld [vmem:[#allocation5 + $0x250] sm:$0xff]
        %v391 = vld [vmem:[#allocation5 + $0x258] sm:$0xff]
        %v392 = vld [vmem:[#allocation5 + $0x260] sm:$0xff]
        %v393 = vld [vmem:[#allocation5 + $0x268] sm:$0xff]
        %v394 = vld [vmem:[#allocation5 + $0x270] sm:$0xff]
        %v395 = vld [vmem:[#allocation5 + $0x278] sm:$0xff]
        %v396 = vld [vmem:[#allocation5 + $0x280] sm:$0xff]
        %v397 = vld [vmem:[#allocation5 + $0x288] sm:$0xff]
        %v398 = vld [vmem:[#allocation5 + $0x290] sm:$0xff]
        %v399 = vld [vmem:[#allocation5 + $0x298] sm:$0xff]
        %v400 = vld [vmem:[#allocation5 + $0x2a0] sm:$0xff]
        %v401 = vld [vmem:[#allocation5 + $0x2a8] sm:$0xff]
        %v402 = vld [vmem:[#allocation5 + $0x2b0] sm:$0xff]
        %v403 = vld [vmem:[#allocation5 + $0x2b8] sm:$0xff]
        %v404 = vld [vmem:[#allocation5 + $0x2c0] sm:$0xff]
        %v405 = vld [vmem:[#allocation5 + $0x2c8] sm:$0xff]
        %v406 = vld [vmem:[#allocation5 + $0x2d0] sm:$0xff]
        %v407 = vld [vmem:[#allocation5 + $0x2d8] sm:$0xff]
        %v408 = vld [vmem:[#allocation5 + $0x2e0] sm:$0xff]
        %v409 = vld [vmem:[#allocation5 + $0x2e8] sm:$0xff]
        %v410 = vld [vmem:[#allocation5 + $0x2f0] sm:$0xff]
        %v411 = vld [vmem:[#allocation5 + $0x2f8] sm:$0xff]
        %v412 = vld [vmem:[#allocation5 + $0x300] sm:$0xff]
        %v413 = vld [vmem:[#allocation5 + $0x308] sm:$0xff]
        %v414 = vld [vmem:[#allocation5 + $0x310] sm:$0xff]
        %v415 = vld [vmem:[#allocation5 + $0x318] sm:$0xff]
        %v416 = vld [vmem:[#allocation5 + $0x320] sm:$0xff]
        %v417 = vld [vmem:[#allocation5 + $0x328] sm:$0xff]
        %v418 = vld [vmem:[#allocation5 + $0x330] sm:$0xff]
        %v419 = vld [vmem:[#allocation5 + $0x338] sm:$0xff]
        %v420 = vld [vmem:[#allocation5 + $0x340] sm:$0xff]
        %v421 = vld [vmem:[#allocation5 + $0x348] sm:$0xff]
        %v422 = vld [vmem:[#allocation5 + $0x350] sm:$0xff]
        %v423 = vld [vmem:[#allocation5 + $0x358] sm:$0xff]
        %v424 = vld [vmem:[#allocation5 + $0x360] sm:$0xff]
        %v425 = vld [vmem:[#allocation5 + $0x368] sm:$0xff]
        %v426 = vld [vmem:[#allocation5 + $0x370] sm:$0xff]
        %v427 = vld [vmem:[#allocation5 + $0x378] sm:$0xff]
        %v428 = vld [vmem:[#allocation5 + $0x380] sm:$0xff]
        %v429 = vld [vmem:[#allocation5 + $0x388] sm:$0xff]
        %v430 = vld [vmem:[#allocation5 + $0x390] sm:$0xff]
        %v431 = vld [vmem:[#allocation5 + $0x398] sm:$0xff]
        %v432 = vld [vmem:[#allocation5 + $0x3a0] sm:$0xff]
        %v433 = vld [vmem:[#allocation5 + $0x3a8] sm:$0xff]
        %v434 = vld [vmem:[#allocation5 + $0x3b0] sm:$0xff]
        %v435 = vld [vmem:[#allocation5 + $0x3b8] sm:$0xff]
        %v436 = vld [vmem:[#allocation5 + $0x3c0] sm:$0xff]
        %v437 = vld [vmem:[#allocation5 + $0x3c8] sm:$0xff]
        %v438 = vld [vmem:[#allocation5 + $0x3d0] sm:$0xff]
        %v439 = vld [vmem:[#allocation5 + $0x3d8] sm:$0xff]
        %v440 = vld [vmem:[#allocation5 + $0x3e0] sm:$0xff]
        %v441 = vld [vmem:[#allocation5 + $0x3e8] sm:$0xff]
        %v442 = vld [vmem:[#allocation5 + $0x3f0] sm:$0xff]
        %v443 = vld [vmem:[#allocation5 + $0x3f8] sm:$0xff]
        %v444 = vld [vmem:[%s3] sm:$0xf]
        %v446 = vlaneseq
        %v447 = vshrl.u32 %v446, 7
        %v448 = vsub.s32 0, %v447
        %v449 = vrot.slane %v444, %v448
        %v450 = vlaneseq
        %v451 = vshrl.u32 %v450, 7
        %v452 = vsub.s32 1, %v451
        %v453 = vrot.slane %v444, %v452
        %v454 = vlaneseq
        %v455 = vshrl.u32 %v454, 7
        %v456 = vsub.s32 2, %v455
        %v457 = vrot.slane %v444, %v456
        %v458 = vlaneseq
        %v459 = vshrl.u32 %v458, 7
        %v460 = vsub.s32 3, %v459
        %v461 = vrot.slane %v444, %v460
        %466 = vmatprep.subr.mxu0 %v377
        %467 = vmatpush1.msra.mxu0 %v376
        %468 = vmatprep.subr.mxu0 %v373
        %469 = vmatpush1.msra.mxu0 %v372
        %470 = vmatprep.subr.mxu0 %v369
        %471 = vmatpush1.msra.mxu0 %v368
        %472 = vmatprep.subr.mxu0 %v365
        %473 = vmatpush1.msra.mxu0 %v364
        %474 = vmatprep.subr.mxu0 %v361
        %475 = vmatpush1.msra.mxu0 %v360
        %476 = vmatprep.subr.mxu0 %v357
        %477 = vmatpush1.msra.mxu0 %v356
        %478 = vmatprep.subr.mxu0 %v353
        %479 = vmatpush1.msra.mxu0 %v352
        %480 = vmatprep.subr.mxu0 %v349
        %481 = vmatpush1.msra.mxu0 %v348
        %482 = vmatprep.subr.mxu0 %v345
        %483 = vmatpush1.msra.mxu0 %v344
        %484 = vmatprep.subr.mxu0 %v341
        %485 = vmatpush1.msra.mxu0 %v340
        %486 = vmatprep.subr.mxu0 %v337
        %487 = vmatpush1.msra.mxu0 %v336
        %488 = vmatprep.subr.mxu0 %v333
        %489 = vmatpush1.msra.mxu0 %v332
        %490 = vmatprep.subr.mxu0 %v329
        %491 = vmatpush1.msra.mxu0 %v328
        %492 = vmatprep.subr.mxu0 %v325
        %493 = vmatpush1.msra.mxu0 %v324
        %494 = vmatprep.subr.mxu0 %v321
        %495 = vmatpush1.msra.mxu0 %v320
        %496 = vmatprep.subr.mxu0 %v317
        %497 = vmatpush1.msra.mxu0 %v316
        %498 = vmatprep.subr.mxu0 %v441
        %499 = vmatpush2.msra.mxu0 %v440
        %500 = vmatprep.subr.mxu0 %v437
        %501 = vmatpush2.msra.mxu0 %v436
        %502 = vmatprep.subr.mxu0 %v433
        %503 = vmatpush2.msra.mxu0 %v432
        %504 = vmatprep.subr.mxu0 %v429
        %505 = vmatpush2.msra.mxu0 %v428
        %506 = vmatprep.subr.mxu0 %v425
        %507 = vmatpush2.msra.mxu0 %v424
        %508 = vmatprep.subr.mxu0 %v421
        %509 = vmatpush2.msra.mxu0 %v420
        %510 = vmatprep.subr.mxu0 %v417
        %511 = vmatpush2.msra.mxu0 %v416
        %512 = vmatprep.subr.mxu0 %v413
        %513 = vmatpush2.msra.mxu0 %v412
        %514 = vmatprep.subr.mxu0 %v409
        %515 = vmatpush2.msra.mxu0 %v408
        %516 = vmatprep.subr.mxu0 %v405
        %517 = vmatpush2.msra.mxu0 %v404
        %518 = vmatprep.subr.mxu0 %v401
        %519 = vmatpush2.msra.mxu0 %v400
        %520 = vmatprep.subr.mxu0 %v397
        %521 = vmatpush2.msra.mxu0 %v396
        %522 = vmatprep.subr.mxu0 %v393
        %523 = vmatpush2.msra.mxu0 %v392
        %524 = vmatprep.subr.mxu0 %v389
        %525 = vmatpush2.msra.mxu0 %v388
        %526 = vmatprep.subr.mxu0 %v385
        %527 = vmatpush2.msra.mxu0 %v384
        %528 = vmatprep.subr.mxu0 %v381
        %529 = vmatpush2.msra.mxu0 %v380
        %530 = vmatprep.mubr.f32.mxu0 %v315
        %531 = vmatmul.mubr.f32.gmra.mxu0 %v314
        %v532 = vpop.f32.mrf.mxu0
        %v533 = vadd.f32 %v449, %v532
        %v534 = vpop.f32.mrf.mxu0
        %v535 = vadd.f32 %v453, %v534
        %536 = vdwg.mxu0
        %537 = vmatprep.subr.mxu0 %v379
        %538 = vmatpush1.msra.mxu0 %v378
        %539 = vmatprep.subr.mxu0 %v375
        %540 = vmatpush1.msra.mxu0 %v374
        %541 = vmatprep.subr.mxu0 %v371
        %542 = vmatpush1.msra.mxu0 %v370
        %543 = vmatprep.subr.mxu0 %v367
        %544 = vmatpush1.msra.mxu0 %v366
        %545 = vmatprep.subr.mxu0 %v363
        %546 = vmatpush1.msra.mxu0 %v362
        %547 = vmatprep.subr.mxu0 %v359
        %548 = vmatpush1.msra.mxu0 %v358
        %549 = vmatprep.subr.mxu0 %v355
        %550 = vmatpush1.msra.mxu0 %v354
        %551 = vmatprep.subr.mxu0 %v351
        %552 = vmatpush1.msra.mxu0 %v350
        %553 = vmatprep.subr.mxu0 %v347
        %554 = vmatpush1.msra.mxu0 %v346
        %555 = vmatprep.subr.mxu0 %v343
        %556 = vmatpush1.msra.mxu0 %v342
        %557 = vmatprep.subr.mxu0 %v339
        %558 = vmatpush1.msra.mxu0 %v338
        %559 = vmatprep.subr.mxu0 %v335
        %560 = vmatpush1.msra.mxu0 %v334
        %561 = vmatprep.subr.mxu0 %v331
        %562 = vmatpush1.msra.mxu0 %v330
        %563 = vmatprep.subr.mxu0 %v327
        %564 = vmatpush1.msra.mxu0 %v326
        %565 = vmatprep.subr.mxu0 %v323
        %566 = vmatpush1.msra.mxu0 %v322
        %567 = vmatprep.subr.mxu0 %v319
        %568 = vmatpush1.msra.mxu0 %v318
        %569 = vmatprep.subr.mxu0 %v443
        %570 = vmatpush2.msra.mxu0 %v442
        %571 = vmatprep.subr.mxu0 %v439
        %572 = vmatpush2.msra.mxu0 %v438
        %573 = vmatprep.subr.mxu0 %v435
        %574 = vmatpush2.msra.mxu0 %v434
        %575 = vmatprep.subr.mxu0 %v431
        %576 = vmatpush2.msra.mxu0 %v430
        %577 = vmatprep.subr.mxu0 %v427
        %578 = vmatpush2.msra.mxu0 %v426
        %579 = vmatprep.subr.mxu0 %v423
        %580 = vmatpush2.msra.mxu0 %v422
        %581 = vmatprep.subr.mxu0 %v419
        %582 = vmatpush2.msra.mxu0 %v418
        %583 = vmatprep.subr.mxu0 %v415
        %584 = vmatpush2.msra.mxu0 %v414
        %585 = vmatprep.subr.mxu0 %v411
        %586 = vmatpush2.msra.mxu0 %v410
        %587 = vmatprep.subr.mxu0 %v407
        %588 = vmatpush2.msra.mxu0 %v406
        %589 = vmatprep.subr.mxu0 %v403
        %590 = vmatpush2.msra.mxu0 %v402
        %591 = vmatprep.subr.mxu0 %v399
        %592 = vmatpush2.msra.mxu0 %v398
        %593 = vmatprep.subr.mxu0 %v395
        %594 = vmatpush2.msra.mxu0 %v394
        %595 = vmatprep.subr.mxu0 %v391
        %596 = vmatpush2.msra.mxu0 %v390
        %597 = vmatprep.subr.mxu0 %v387
        %598 = vmatpush2.msra.mxu0 %v386
        %599 = vmatprep.subr.mxu0 %v383
        %600 = vmatpush2.msra.mxu0 %v382
        %601 = vmatprep.mubr.f32.mxu0 %v315
        %602 = vmatmul.mubr.f32.gmra.mxu0 %v314
        %v603 = vpop.f32.mrf.mxu0
        %v604 = vadd.f32 %v457, %v603
        %v605 = vpop.f32.mrf.mxu0
        %v606 = vadd.f32 %v461, %v605
        %607 = vdwg.mxu0
        %v608 = vtanh.pop %v533
        %v609 = vtanh.pop %v535
        %v610 = vtanh.pop %v604
        %v611 = vtanh.pop %v606
        %v612 = vld [vmem:[#allocation7] sm:$0xff]
        %v613 = vld [vmem:[#allocation7 + $0x8] sm:$0xff]
        %v614 = vld [vmem:[#allocation7 + $0x10] sm:$0xff]
        %v615 = vld [vmem:[#allocation7 + $0x18] sm:$0xff]
        %v616 = vld [vmem:[#allocation7 + $0x20] sm:$0xff]
        %v617 = vld [vmem:[#allocation7 + $0x28] sm:$0xff]
        %v618 = vld [vmem:[#allocation7 + $0x30] sm:$0xff]
        %v619 = vld [vmem:[#allocation7 + $0x38] sm:$0xff]
        %v620 = vld [vmem:[#allocation7 + $0x40] sm:$0xff]
        %v621 = vld [vmem:[#allocation7 + $0x48] sm:$0xff]
        %v622 = vld [vmem:[#allocation7 + $0x50] sm:$0xff]
        %v623 = vld [vmem:[#allocation7 + $0x58] sm:$0xff]
        %v624 = vld [vmem:[#allocation7 + $0x60] sm:$0xff]
        %v625 = vld [vmem:[#allocation7 + $0x68] sm:$0xff]
        %v626 = vld [vmem:[#allocation7 + $0x70] sm:$0xff]
        %v627 = vld [vmem:[#allocation7 + $0x78] sm:$0xff]
        %v628 = vld [vmem:[#allocation7 + $0x80] sm:$0xff]
        %v629 = vld [vmem:[#allocation7 + $0x88] sm:$0xff]
        %v630 = vld [vmem:[#allocation7 + $0x90] sm:$0xff]
        %v631 = vld [vmem:[#allocation7 + $0x98] sm:$0xff]
        %v632 = vld [vmem:[#allocation7 + $0xa0] sm:$0xff]
        %v633 = vld [vmem:[#allocation7 + $0xa8] sm:$0xff]
        %v634 = vld [vmem:[#allocation7 + $0xb0] sm:$0xff]
        %v635 = vld [vmem:[#allocation7 + $0xb8] sm:$0xff]
        %v636 = vld [vmem:[#allocation7 + $0xc0] sm:$0xff]
        %v637 = vld [vmem:[#allocation7 + $0xc8] sm:$0xff]
        %v638 = vld [vmem:[#allocation7 + $0xd0] sm:$0xff]
        %v639 = vld [vmem:[#allocation7 + $0xd8] sm:$0xff]
        %v640 = vld [vmem:[#allocation7 + $0xe0] sm:$0xff]
        %v641 = vld [vmem:[#allocation7 + $0xe8] sm:$0xff]
        %v642 = vld [vmem:[#allocation7 + $0xf0] sm:$0xff]
        %v643 = vld [vmem:[#allocation7 + $0xf8] sm:$0xff]
        %v644 = vld [vmem:[#allocation7 + $0x100] sm:$0xff]
        %v645 = vld [vmem:[#allocation7 + $0x108] sm:$0xff]
        %v646 = vld [vmem:[#allocation7 + $0x110] sm:$0xff]
        %v647 = vld [vmem:[#allocation7 + $0x118] sm:$0xff]
        %v648 = vld [vmem:[#allocation7 + $0x120] sm:$0xff]
        %v649 = vld [vmem:[#allocation7 + $0x128] sm:$0xff]
        %v650 = vld [vmem:[#allocation7 + $0x130] sm:$0xff]
        %v651 = vld [vmem:[#allocation7 + $0x138] sm:$0xff]
        %v652 = vld [vmem:[#allocation7 + $0x140] sm:$0xff]
        %v653 = vld [vmem:[#allocation7 + $0x148] sm:$0xff]
        %v654 = vld [vmem:[#allocation7 + $0x150] sm:$0xff]
        %v655 = vld [vmem:[#allocation7 + $0x158] sm:$0xff]
        %v656 = vld [vmem:[#allocation7 + $0x160] sm:$0xff]
        %v657 = vld [vmem:[#allocation7 + $0x168] sm:$0xff]
        %v658 = vld [vmem:[#allocation7 + $0x170] sm:$0xff]
        %v659 = vld [vmem:[#allocation7 + $0x178] sm:$0xff]
        %v660 = vld [vmem:[#allocation7 + $0x180] sm:$0xff]
        %v661 = vld [vmem:[#allocation7 + $0x188] sm:$0xff]
        %v662 = vld [vmem:[#allocation7 + $0x190] sm:$0xff]
        %v663 = vld [vmem:[#allocation7 + $0x198] sm:$0xff]
        %v664 = vld [vmem:[#allocation7 + $0x1a0] sm:$0xff]
        %v665 = vld [vmem:[#allocation7 + $0x1a8] sm:$0xff]
        %v666 = vld [vmem:[#allocation7 + $0x1b0] sm:$0xff]
        %v667 = vld [vmem:[#allocation7 + $0x1b8] sm:$0xff]
        %v668 = vld [vmem:[#allocation7 + $0x1c0] sm:$0xff]
        %v669 = vld [vmem:[#allocation7 + $0x1c8] sm:$0xff]
        %v670 = vld [vmem:[#allocation7 + $0x1d0] sm:$0xff]
        %v671 = vld [vmem:[#allocation7 + $0x1d8] sm:$0xff]
        %v672 = vld [vmem:[#allocation7 + $0x1e0] sm:$0xff]
        %v673 = vld [vmem:[#allocation7 + $0x1e8] sm:$0xff]
        %v674 = vld [vmem:[#allocation7 + $0x1f0] sm:$0xff]
        %v675 = vld [vmem:[#allocation7 + $0x1f8] sm:$0xff]
        %v676 = vld [vmem:[#allocation7 + $0x200] sm:$0xff]
        %v677 = vld [vmem:[#allocation7 + $0x208] sm:$0xff]
        %v678 = vld [vmem:[#allocation7 + $0x210] sm:$0xff]
        %v679 = vld [vmem:[#allocation7 + $0x218] sm:$0xff]
        %v680 = vld [vmem:[#allocation7 + $0x220] sm:$0xff]
        %v681 = vld [vmem:[#allocation7 + $0x228] sm:$0xff]
        %v682 = vld [vmem:[#allocation7 + $0x230] sm:$0xff]
        %v683 = vld [vmem:[#allocation7 + $0x238] sm:$0xff]
        %v684 = vld [vmem:[#allocation7 + $0x240] sm:$0xff]
        %v685 = vld [vmem:[#allocation7 + $0x248] sm:$0xff]
        %v686 = vld [vmem:[#allocation7 + $0x250] sm:$0xff]
        %v687 = vld [vmem:[#allocation7 + $0x258] sm:$0xff]
        %v688 = vld [vmem:[#allocation7 + $0x260] sm:$0xff]
        %v689 = vld [vmem:[#allocation7 + $0x268] sm:$0xff]
        %v690 = vld [vmem:[#allocation7 + $0x270] sm:$0xff]
        %v691 = vld [vmem:[#allocation7 + $0x278] sm:$0xff]
        %v692 = vld [vmem:[#allocation7 + $0x280] sm:$0xff]
        %v693 = vld [vmem:[#allocation7 + $0x288] sm:$0xff]
        %v694 = vld [vmem:[#allocation7 + $0x290] sm:$0xff]
        %v695 = vld [vmem:[#allocation7 + $0x298] sm:$0xff]
        %v696 = vld [vmem:[#allocation7 + $0x2a0] sm:$0xff]
        %v697 = vld [vmem:[#allocation7 + $0x2a8] sm:$0xff]
        %v698 = vld [vmem:[#allocation7 + $0x2b0] sm:$0xff]
        %v699 = vld [vmem:[#allocation7 + $0x2b8] sm:$0xff]
        %v700 = vld [vmem:[#allocation7 + $0x2c0] sm:$0xff]
        %v701 = vld [vmem:[#allocation7 + $0x2c8] sm:$0xff]
        %v702 = vld [vmem:[#allocation7 + $0x2d0] sm:$0xff]
        %v703 = vld [vmem:[#allocation7 + $0x2d8] sm:$0xff]
        %v704 = vld [vmem:[#allocation7 + $0x2e0] sm:$0xff]
        %v705 = vld [vmem:[#allocation7 + $0x2e8] sm:$0xff]
        %v706 = vld [vmem:[#allocation7 + $0x2f0] sm:$0xff]
        %v707 = vld [vmem:[#allocation7 + $0x2f8] sm:$0xff]
        %v708 = vld [vmem:[#allocation7 + $0x300] sm:$0xff]
        %v709 = vld [vmem:[#allocation7 + $0x308] sm:$0xff]
        %v710 = vld [vmem:[#allocation7 + $0x310] sm:$0xff]
        %v711 = vld [vmem:[#allocation7 + $0x318] sm:$0xff]
        %v712 = vld [vmem:[#allocation7 + $0x320] sm:$0xff]
        %v713 = vld [vmem:[#allocation7 + $0x328] sm:$0xff]
        %v714 = vld [vmem:[#allocation7 + $0x330] sm:$0xff]
        %v715 = vld [vmem:[#allocation7 + $0x338] sm:$0xff]
        %v716 = vld [vmem:[#allocation7 + $0x340] sm:$0xff]
        %v717 = vld [vmem:[#allocation7 + $0x348] sm:$0xff]
        %v718 = vld [vmem:[#allocation7 + $0x350] sm:$0xff]
        %v719 = vld [vmem:[#allocation7 + $0x358] sm:$0xff]
        %v720 = vld [vmem:[#allocation7 + $0x360] sm:$0xff]
        %v721 = vld [vmem:[#allocation7 + $0x368] sm:$0xff]
        %v722 = vld [vmem:[#allocation7 + $0x370] sm:$0xff]
        %v723 = vld [vmem:[#allocation7 + $0x378] sm:$0xff]
        %v724 = vld [vmem:[#allocation7 + $0x380] sm:$0xff]
        %v725 = vld [vmem:[#allocation7 + $0x388] sm:$0xff]
        %v726 = vld [vmem:[#allocation7 + $0x390] sm:$0xff]
        %v727 = vld [vmem:[#allocation7 + $0x398] sm:$0xff]
        %v728 = vld [vmem:[#allocation7 + $0x3a0] sm:$0xff]
        %v729 = vld [vmem:[#allocation7 + $0x3a8] sm:$0xff]
        %v730 = vld [vmem:[#allocation7 + $0x3b0] sm:$0xff]
        %v731 = vld [vmem:[#allocation7 + $0x3b8] sm:$0xff]
        %v732 = vld [vmem:[#allocation7 + $0x3c0] sm:$0xff]
        %v733 = vld [vmem:[#allocation7 + $0x3c8] sm:$0xff]
        %v734 = vld [vmem:[#allocation7 + $0x3d0] sm:$0xff]
        %v735 = vld [vmem:[#allocation7 + $0x3d8] sm:$0xff]
        %v736 = vld [vmem:[#allocation7 + $0x3e0] sm:$0xff]
        %v737 = vld [vmem:[#allocation7 + $0x3e8] sm:$0xff]
        %v738 = vld [vmem:[#allocation7 + $0x3f0] sm:$0xff]
        %v739 = vld [vmem:[#allocation7 + $0x3f8] sm:$0xff]
        %v740 = vld [vmem:[%s5] sm:$0x3]
        %v742 = vlaneseq
        %v743 = vshrl.u32 %v742, 7
        %v744 = vsub.s32 0, %v743
        %v745 = vrot.slane %v740, %v744
        %v746 = vlaneseq
        %v747 = vshrl.u32 %v746, 7
        %v748 = vsub.s32 1, %v747
        %v749 = vrot.slane %v740, %v748
        %752 = vmatprep.subr.mxu0 %v643
        %753 = vmatpush1.msra.mxu0 %v642
        %754 = vmatprep.subr.mxu0 %v641
        %755 = vmatpush1.msra.mxu0 %v640
        %756 = vmatprep.subr.mxu0 %v639
        %757 = vmatpush1.msra.mxu0 %v638
        %758 = vmatprep.subr.mxu0 %v637
        %759 = vmatpush1.msra.mxu0 %v636
        %760 = vmatprep.subr.mxu0 %v635
        %761 = vmatpush1.msra.mxu0 %v634
        %762 = vmatprep.subr.mxu0 %v633
        %763 = vmatpush1.msra.mxu0 %v632
        %764 = vmatprep.subr.mxu0 %v631
        %765 = vmatpush1.msra.mxu0 %v630
        %766 = vmatprep.subr.mxu0 %v629
        %767 = vmatpush1.msra.mxu0 %v628
        %768 = vmatprep.subr.mxu0 %v627
        %769 = vmatpush1.msra.mxu0 %v626
        %770 = vmatprep.subr.mxu0 %v625
        %771 = vmatpush1.msra.mxu0 %v624
        %772 = vmatprep.subr.mxu0 %v623
        %773 = vmatpush1.msra.mxu0 %v622
        %774 = vmatprep.subr.mxu0 %v621
        %775 = vmatpush1.msra.mxu0 %v620
        %776 = vmatprep.subr.mxu0 %v619
        %777 = vmatpush1.msra.mxu0 %v618
        %778 = vmatprep.subr.mxu0 %v617
        %779 = vmatpush1.msra.mxu0 %v616
        %780 = vmatprep.subr.mxu0 %v615
        %781 = vmatpush1.msra.mxu0 %v614
        %782 = vmatprep.subr.mxu0 %v613
        %783 = vmatpush1.msra.mxu0 %v612
        %784 = vmatprep.subr.mxu0 %v675
        %785 = vmatpush2.msra.mxu0 %v674
        %786 = vmatprep.subr.mxu0 %v673
        %787 = vmatpush2.msra.mxu0 %v672
        %788 = vmatprep.subr.mxu0 %v671
        %789 = vmatpush2.msra.mxu0 %v670
        %790 = vmatprep.subr.mxu0 %v669
        %791 = vmatpush2.msra.mxu0 %v668
        %792 = vmatprep.subr.mxu0 %v667
        %793 = vmatpush2.msra.mxu0 %v666
        %794 = vmatprep.subr.mxu0 %v665
        %795 = vmatpush2.msra.mxu0 %v664
        %796 = vmatprep.subr.mxu0 %v663
        %797 = vmatpush2.msra.mxu0 %v662
        %798 = vmatprep.subr.mxu0 %v661
        %799 = vmatpush2.msra.mxu0 %v660
        %800 = vmatprep.subr.mxu0 %v659
        %801 = vmatpush2.msra.mxu0 %v658
        %802 = vmatprep.subr.mxu0 %v657
        %803 = vmatpush2.msra.mxu0 %v656
        %804 = vmatprep.subr.mxu0 %v655
        %805 = vmatpush2.msra.mxu0 %v654
        %806 = vmatprep.subr.mxu0 %v653
        %807 = vmatpush2.msra.mxu0 %v652
        %808 = vmatprep.subr.mxu0 %v651
        %809 = vmatpush2.msra.mxu0 %v650
        %810 = vmatprep.subr.mxu0 %v649
        %811 = vmatpush2.msra.mxu0 %v648
        %812 = vmatprep.subr.mxu0 %v647
        %813 = vmatpush2.msra.mxu0 %v646
        %814 = vmatprep.subr.mxu0 %v645
        %815 = vmatpush2.msra.mxu0 %v644
        %816 = vmatprep.mubr.f32.mxu0 %v609
        %817 = vmatmul.mubr.f32.gmra.mxu0 %v608
        %v818 = vpop.f32.mrf.mxu0
        %v819 = vadd.f32 %v745, %v818
        %v820 = vpop.f32.mrf.mxu0
        %v821 = vadd.f32 %v749, %v820
        %822 = vdwg.mxu0
        %823 = vmatprep.subr.mxu0 %v707
        %824 = vmatpush1.msra.mxu0 %v706
        %825 = vmatprep.subr.mxu0 %v705
        %826 = vmatpush1.msra.mxu0 %v704
        %827 = vmatprep.subr.mxu0 %v703
        %828 = vmatpush1.msra.mxu0 %v702
        %829 = vmatprep.subr.mxu0 %v701
        %830 = vmatpush1.msra.mxu0 %v700
        %831 = vmatprep.subr.mxu0 %v699
        %832 = vmatpush1.msra.mxu0 %v698
        %833 = vmatprep.subr.mxu0 %v697
        %834 = vmatpush1.msra.mxu0 %v696
        %835 = vmatprep.subr.mxu0 %v695
        %836 = vmatpush1.msra.mxu0 %v694
        %837 = vmatprep.subr.mxu0 %v693
        %838 = vmatpush1.msra.mxu0 %v692
        %839 = vmatprep.subr.mxu0 %v691
        %840 = vmatpush1.msra.mxu0 %v690
        %841 = vmatprep.subr.mxu0 %v689
        %842 = vmatpush1.msra.mxu0 %v688
        %843 = vmatprep.subr.mxu0 %v687
        %844 = vmatpush1.msra.mxu0 %v686
        %845 = vmatprep.subr.mxu0 %v685
        %846 = vmatpush1.msra.mxu0 %v684
        %847 = vmatprep.subr.mxu0 %v683
        %848 = vmatpush1.msra.mxu0 %v682
        %849 = vmatprep.subr.mxu0 %v681
        %850 = vmatpush1.msra.mxu0 %v680
        %851 = vmatprep.subr.mxu0 %v679
        %852 = vmatpush1.msra.mxu0 %v678
        %853 = vmatprep.subr.mxu0 %v677
        %854 = vmatpush1.msra.mxu0 %v676
        %855 = vmatprep.subr.mxu0 %v739
        %856 = vmatpush2.msra.mxu0 %v738
        %857 = vmatprep.subr.mxu0 %v737
        %858 = vmatpush2.msra.mxu0 %v736
        %859 = vmatprep.subr.mxu0 %v735
        %860 = vmatpush2.msra.mxu0 %v734
        %861 = vmatprep.subr.mxu0 %v733
        %862 = vmatpush2.msra.mxu0 %v732
        %863 = vmatprep.subr.mxu0 %v731
        %864 = vmatpush2.msra.mxu0 %v730
        %865 = vmatprep.subr.mxu0 %v729
        %866 = vmatpush2.msra.mxu0 %v728
        %867 = vmatprep.subr.mxu0 %v727
        %868 = vmatpush2.msra.mxu0 %v726
        %869 = vmatprep.subr.mxu0 %v725
        %870 = vmatpush2.msra.mxu0 %v724
        %871 = vmatprep.subr.mxu0 %v723
        %872 = vmatpush2.msra.mxu0 %v722
        %873 = vmatprep.subr.mxu0 %v721
        %874 = vmatpush2.msra.mxu0 %v720
        %875 = vmatprep.subr.mxu0 %v719
        %876 = vmatpush2.msra.mxu0 %v718
        %877 = vmatprep.subr.mxu0 %v717
        %878 = vmatpush2.msra.mxu0 %v716
        %879 = vmatprep.subr.mxu0 %v715
        %880 = vmatpush2.msra.mxu0 %v714
        %881 = vmatprep.subr.mxu0 %v713
        %882 = vmatpush2.msra.mxu0 %v712
        %883 = vmatprep.subr.mxu0 %v711
        %884 = vmatpush2.msra.mxu0 %v710
        %885 = vmatprep.subr.mxu0 %v709
        %886 = vmatpush2.msra.mxu0 %v708
        %887 = vmatprep.mubr.f32.mxu0 %v611
        %888 = vmatmul.mubr.f32.gmra.mxu0 %v610
        %v889 = vpop.f32.mrf.mxu0
        %v890 = vadd.f32 %v819, %v889
        %v891 = vpop.f32.mrf.mxu0
        %v892 = vadd.f32 %v821, %v891
        %893 = vdwg.mxu0
        %v894 = vld [vmem:[%s313] sm:$0xff]
        %896 = vset.pattern.permute.xlu0 0
        %897 = vperm.xlu0 %896, %v894
        %v898 = vpop.permute.xlu0 %897
        %v900 = vmul.f32 %v898, %v890
        %v901 = vmul.f32 %v898, %v892
        %v902 = vadd.f32 %v314, %v900
        %v903 = vadd.f32 %v315, %v901
        %904 = vst [vmem:[%s309] sm:$0xff] %v902
        %905 = vst [vmem:[%s309 + $0x8] sm:$0xff] %v903
        %906 = vset.pattern.permute.xlu0 1
        %907 = vperm.xlu0 %906, %v894
        %v908 = vpop.permute.xlu0 %907
        %v910 = vmul.f32 %v908, %v890
        %v911 = vmul.f32 %v908, %v892
        %v912 = vadd.f32 %v314, %v910
        %v913 = vadd.f32 %v315, %v911
        %914 = vst [vmem:[%s309 + $0x10] sm:$0xff] %v912
        %915 = vst [vmem:[%s309 + $0x18] sm:$0xff] %v913
        %916 = vset.pattern.permute.xlu0 2
        %917 = vperm.xlu0 %916, %v894
        %v918 = vpop.permute.xlu0 %917
        %v920 = vmul.f32 %v918, %v890
        %v921 = vmul.f32 %v918, %v892
        %v922 = vadd.f32 %v314, %v920
        %v923 = vadd.f32 %v315, %v921
        %924 = vst [vmem:[%s309 + $0x20] sm:$0xff] %v922
        %925 = vst [vmem:[%s309 + $0x28] sm:$0xff] %v923
        %926 = vset.pattern.permute.xlu0 3
        %927 = vperm.xlu0 %926, %v894
        %v928 = vpop.permute.xlu0 %927
        %v930 = vmul.f32 %v928, %v890
        %v931 = vmul.f32 %v928, %v892
        %v932 = vadd.f32 %v314, %v930
        %v933 = vadd.f32 %v315, %v931
        %934 = vst [vmem:[%s309 + $0x30] sm:$0xff] %v932
        %935 = vst [vmem:[%s309 + $0x38] sm:$0xff] %v933
        %s936 = sand.u32 %s168, 1
        %s937 = scalar_lea.sflag [#allocation4], %s936
        %s938 = sand.u32 %s168, 1
        %s939 = smul.addr %s938, 64
        %s940 = scalar_lea.vmem [#allocation8], %s939
        // Predicated region
        $region57: #{tpu_custom_call.1} parent=43 // pred_check
          %p941 = pneg %p178
        $region58: #{tpu_custom_call.1} parent=43 // pred_check_branch
          %943 = sbr.rel (%p941) target = $region60
        $region59: #{tpu_custom_call.1} parent=43 // pred_region
          %s945 = ssub.s32 1024, 1024
          %946 = vsyncadd %s937, %s945
          %s947 = smul.addr %s24, 8
          %s948 = smul.addr %s947, 128
          %s949 = scalar_lea.hbm %s6, %s948
          %s951 = sshll.u32 %s940, 4
          %s952 = int_to_ptr.vmem [resolvable:$true] %s951
          %954 = dma.vmem_to_hbm [thread:$0]  %s952, 1024, %s949, %s937
        $region60: #{tpu_custom_call.1} parent=43 // pred_fallthru
          _
      $region44: #{tpu_custom_call.1} parent=5 // pred_fallthru
        _
      %p955 = scmp.le.s32.totalorder 2, %s19
      // Predicated region
      $region61: #{tpu_custom_call.1} parent=5 // pred_check
        %p956 = pneg %p955
      $region62: #{tpu_custom_call.1} parent=5 // pred_check_branch
        %958 = sbr.rel (%p956) target = $region64
      $region63: #{tpu_custom_call.1} parent=5 // pred_region
        %s959 = ssub.s32 %s19, 2
        // Predicated region
        $region65: #{tpu_custom_call.1} parent=63 // pred_check
          %p960 = pneg %p184
        $region66: #{tpu_custom_call.1} parent=63 // pred_check_branch
          %962 = sbr.rel (%p960) target = $region68
        $region67: #{tpu_custom_call.1} parent=63 // pred_region
          %s963 = sand.u32 %s169, 1
          %s964 = scalar_lea.sflag [#allocation4], %s963
          %s965 = sand.u32 %s169, 1
          %s966 = smul.addr %s965, 64
          %s967 = scalar_lea.vmem [#allocation8], %s966
          %968 = dma.done %s964, 1024
        $region68: #{tpu_custom_call.1} parent=63 // pred_fallthru
          _
      $region64: #{tpu_custom_call.1} parent=5 // pred_fallthru
        _
    $region6: #{tpu_custom_call.1} parent=1 // loop_footer
      %s23 = sadd.s32 1, %s19
    $region7: #{tpu_custom_call.1} parent=1 // loop_footer_branch
      %18 = sbr.rel target = $region3
    $region8: #{tpu_custom_call.1} parent=1 // loop_exit
      _
    %969 = vsyncpa [#allocation3], 1
    %s970 = scalar_lea.sflag [#allocation3], 1
    %971 = vsyncpa %s970, 1
    %972 = vsyncpa [#allocation6], 1
    %973 = vsyncpa [#allocation4], 1
    %s974 = scalar_lea.sflag [#allocation4], 1
    %975 = vsyncpa %s974, 1

</llo_original>
